<compile_context>
chip_gen: v7x
topology: tpu7x:2x2x1
jax: 0.10.0
libtpu: 0.0.40
codegen_flags: <defaults>
</compile_context>

<pallas_src>
from collections import OrderedDict
import functools

import jax
import jax.numpy as jnp
from jax.experimental import pallas as pl
from jax.experimental.pallas import tpu as pltpu


MATMUL_DTYPE = jnp.bfloat16   # MXU operand dtype (accumulation is always f32)


def _round_up(x, m):
    return (x + m - 1) // m * m


@functools.lru_cache(maxsize=None)
def _vmem_capacity_bytes():
    """Physical VMEM per core (v5e/v6e: 128 MiB, v7x: 64 MiB)."""
    try:
        return int(pltpu.get_tpu_info().vmem_capacity_bytes)
    except Exception:
        return 64 * 1024 * 1024


def _tile_budget_bytes():
    """Working budget for pipelined tiles (leaves headroom for XLA fusions)."""
    return min(_vmem_capacity_bytes() // 4, 32 * 1024 * 1024)


def _vmem_limit(need_bytes):
    """Tight, shape-derived scoped-VMEM limit (~2x headroom)."""
    return int(min(max(16 * 1024 * 1024, 2 * int(need_bytes)),
                   _vmem_capacity_bytes() * 3 // 4))


def _compiler_params(dim_sem, need_bytes):
    return pltpu.CompilerParams(
        dimension_semantics=dim_sem,
        vmem_limit_bytes=_vmem_limit(need_bytes),
    )


# ----------------------------------------------------------------------------
# 1x1x1 conv: out = W @ X (+ bias) (+ residual), spatial on the lane axis
# ----------------------------------------------------------------------------
def _conv1x1_kernel(x_ref, w_ref, b_ref, o_ref):
    # x: (Cin, ts) bf16, w: (Cout, Cin) bf16, b: (Cout, 1) f32, o: (Cout, ts)
    acc = jnp.dot(w_ref[...], x_ref[...], preferred_element_type=jnp.float32)
    o_ref[...] = (acc + b_ref[...]).astype(o_ref.dtype)


def _conv1x1_res_kernel(x_ref, w_ref, b_ref, r_ref, o_ref):
    acc = jnp.dot(w_ref[...], x_ref[...], preferred_element_type=jnp.float32)
    acc = acc + b_ref[...] + r_ref[...].astype(jnp.float32)
    o_ref[...] = acc.astype(o_ref.dtype)


def conv3d_1x1(x, w, b, residual=None, out_dtype=jnp.float32):
    """Pointwise Conv3d.  x: (N, Cin, D, H, W), w: (Cout, Cin), b: (Cout,).
    residual (optional): (N, Cout, D, H, W), fused into the bias add."""
    n, cin, d, h, wd = x.shape
    cout = w.shape[0]
    s = d * h * wd
    x_bytes = jnp.dtype(MATMUL_DTYPE).itemsize
    out_bytes = jnp.dtype(out_dtype).itemsize
    res_bytes = jnp.dtype(residual.dtype).itemsize if residual is not None else 0

    # Lane tile: largest multiple of 128 fitting the tile budget (double-
    # buffered in/out/residual streams + resident weights/bias).
    fixed = cout * cin * x_bytes + cout * 4
    per_lane = 2 * (cin * x_bytes + cout * out_bytes + cout * res_bytes)
    cap = max(128, (_tile_budget_bytes() - fixed) // max(per_lane, 1) // 128 * 128)
    ts = int(min(32768, cap, _round_up(s, 128)))

    s_pad = _round_up(s, ts)
    n_tiles = s_pad // ts

    xf = x.astype(MATMUL_DTYPE).reshape(n, cin, s)
    if s_pad != s:
        xf = jnp.pad(xf, ((0, 0), (0, 0), (0, s_pad - s)))
    wc = w.astype(MATMUL_DTYPE)
    bc = b.reshape(cout, 1).astype(jnp.float32)

    in_specs = [
        pl.BlockSpec((None, cin, ts), lambda i, j: (i, 0, j)),
        pl.BlockSpec((cout, cin), lambda i, j: (0, 0)),
        pl.BlockSpec((cout, 1), lambda i, j: (0, 0)),
    ]
    operands = [xf, wc, bc]
    kernel = _conv1x1_kernel
    flops = 2 * n * s_pad * cout * cin
    bytes_accessed = (n * cin * s_pad * x_bytes + cout * cin * x_bytes
                      + cout * 4 + n * cout * s_pad * out_bytes)

    if residual is not None:
        rf = residual.reshape(n, cout, s)
        if s_pad != s:
            rf = jnp.pad(rf, ((0, 0), (0, 0), (0, s_pad - s)))
        in_specs.append(pl.BlockSpec((None, cout, ts), lambda i, j: (i, 0, j)))
        operands.append(rf)
        kernel = _conv1x1_res_kernel
        bytes_accessed += n * cout * s_pad * res_bytes

    need = fixed + per_lane * ts
    out = pl.pallas_call(
        kernel,
        out_shape=jax.ShapeDtypeStruct((n, cout, s_pad), out_dtype),
        grid=(n, n_tiles),
        in_specs=in_specs,
        out_specs=pl.BlockSpec((None, cout, ts), lambda i, j: (i, 0, j)),
        compiler_params=_compiler_params(("parallel", "parallel"), need),
        cost_estimate=pl.CostEstimate(flops=flops, transcendentals=0,
                                      bytes_accessed=bytes_accessed),
    )(*operands)
    return out[:, :, :s].reshape(n, cout, d, h, wd)


# ----------------------------------------------------------------------------
# 3x3x3 conv (padding=1): K-folded single matmul per depth, D-blocked grid
# ----------------------------------------------------------------------------
def _make_conv3x3_kernel(d_blk, cin, wp, lcomp):
    # tap t = kd*9 + kh*3 + kw ; lane offset of the shifted plane = kh*wp + kw
    taps = [(kd, kd * 9 + kh * 3 + kw, kh * wp + kw)
            for kd in range(3) for kh in range(3) for kw in range(3)]

    def kernel(xm_ref, xh_ref, w_ref, b_ref, o_ref, stk_ref):
        # xm: (d_blk, Cin, Lin) bf16   -- padded depth rows [j*d_blk, j*d_blk+d_blk)
        # xh: (2, Cin, Lin)     bf16   -- 2-row halo rows   [(j+1)*d_blk, +2)
        # w:  (Cout, 27*Cin)    bf16 ; b: (Cout, 1) f32
        # o:  (d_blk, Cout, Lcomp) f32 ; stk: (27*Cin, Lcomp) bf16 scratch
        bias = b_ref[...]
        for od in range(d_blk):
            # Build the stacked (27*Cin, Lcomp) operand for this output depth.
            for kd, t, off in taps:
                r = od + kd
                src = xm_ref if r < d_blk else xh_ref
                ri = r if r < d_blk else r - d_blk
                stk_ref[pl.ds(t * cin, cin), :] = src[ri, :, pl.ds(off, lcomp)]
            # One MXU matmul with K = 27*Cin instead of 27 thin dots.
            acc = jnp.dot(w_ref[...], stk_ref[...],
                          preferred_element_type=jnp.float32)
            o_ref[od] = (acc + bias).astype(o_ref.dtype)

    return kernel


def conv3d_3x3(x, w, b):
    """3x3x3 Conv3d, padding=1.  x: (N, Cin, D, H, W), w: (3, 3, 3, Cout, Cin),
    b: (Cout,)."""
    n, cin, d, h, wd = x.shape
    cout = w.shape[3]
    hp, wp = h + 2, wd + 2

    d_blk = min(8, _round_up(d, 2))          # even, so the 2-row halo aligns
    d_pad = _round_up(d, d_blk)
    n_dblk = d_pad // d_blk

    lcomp = _round_up(h * wp, 128)           # output lanes per depth row
    lin = _round_up(lcomp + 2 * wp + 2, 128) # input lanes per padded plane
    # TODO(synk): for realistic FPN planes (H*Wp >> 4K lanes, Cin~256) the lane
    # axis must also be grid-tiled with a 2*wp+2 halo to fit v7x's 64 MiB VMEM;
    # the toy shapes here fit comfortably on every generation.

    x_bytes = jnp.dtype(MATMUL_DTYPE).itemsize

    # (N, Cin, D, H, W) -> zero-pad spatial -> (N, D+2, Cin, Hp*Wp)
    # -> pad depth rows to d_pad+2 and lanes to lin (zeros).
    xp = jnp.pad(x.astype(MATMUL_DTYPE), ((0, 0), (0, 0), (1, 1), (1, 1), (1, 1)))
    xp = jnp.transpose(xp, (0, 2, 1, 3, 4)).reshape(n, d + 2, cin, hp * wp)
    xp = jnp.pad(xp, ((0, 0), (0, d_pad - d), (0, 0), (0, lin - hp * wp)))

    # (3,3,3,Cout,Cin) -> (Cout, 27*Cin); column block t = kd*9+kh*3+kw holds
    # that tap's Cin weights (matches the in-kernel stacked operand).
    w2d = jnp.transpose(w, (3, 0, 1, 2, 4)).reshape(cout, 27 * cin)
    w2d = w2d.astype(MATMUL_DTYPE)
    bc = b.reshape(cout, 1).astype(jnp.float32)

    flops = 2 * n * d_pad * cout * 27 * cin * lcomp
    bytes_accessed = (n * n_dblk * (d_blk + 2) * cin * lin * x_bytes
                      + 27 * cout * cin * x_bytes + cout * 4
                      + n * d_pad * cout * lcomp * 4)

    need = (2 * (d_blk + 2) * cin * lin * x_bytes     # main + halo, double-buf
            + 2 * d_blk * cout * lcomp * 4            # output, double-buf
            + 27 * cin * cout * x_bytes + cout * 4    # resident weights + bias
            + 27 * cin * lcomp * x_bytes)             # stacking scratch

    out = pl.pallas_call(
        _make_conv3x3_kernel(d_blk, cin, wp, lcomp),
        out_shape=jax.ShapeDtypeStruct((n, d_pad, cout, lcomp), jnp.float32),
        grid=(n, n_dblk),
        in_specs=[
            # main D block: padded depth rows [j*d_blk, j*d_blk + d_blk)
            pl.BlockSpec((None, d_blk, cin, lin), lambda i, j: (i, j, 0, 0)),
            # 2-row halo: padded depth rows [(j+1)*d_blk, (j+1)*d_blk + 2)
            pl.BlockSpec((None, 2, cin, lin),
                         lambda i, j: (i, (j + 1) * (d_blk // 2), 0, 0)),
            pl.BlockSpec((cout, 27 * cin), lambda i, j: (0, 0)),
            pl.BlockSpec((cout, 1), lambda i, j: (0, 0)),
        ],
        out_specs=pl.BlockSpec((None, d_blk, cout, lcomp),
                               lambda i, j: (i, j, 0, 0)),
        scratch_shapes=[pltpu.VMEM((27 * cin, lcomp), MATMUL_DTYPE)],
        compiler_params=_compiler_params(("parallel", "parallel"), need),
        cost_estimate=pl.CostEstimate(flops=flops, transcendentals=0,
                                      bytes_accessed=bytes_accessed),
    )(xp, xp, w2d, bc)

    # (N, d_pad, Cout, Lcomp) -> valid (D, H, W) window -> (N, Cout, D, H, W)
    out = out[:, :d, :, :h * wp].reshape(n, d, cout, h, wp)[..., :wd]
    return jnp.transpose(out, (0, 2, 1, 3, 4))


# ----------------------------------------------------------------------------
# Top-down nearest-exact upsample (XLA glue)
# ----------------------------------------------------------------------------
def nearest_exact_resize(x, size):
    """x: (N, C, D, H, W) -> (N, C, *size), PyTorch 'nearest-exact' semantics."""
    # TODO(synk): could be fused into the 1x1-conv kernel via a scalar-prefetch
    # source-index table; kept as XLA gathers (one HBM materialization / level).
    def src_idx(out_s, in_s):
        scale = in_s / out_s
        idx = jnp.floor((jnp.arange(out_s, dtype=jnp.float32) + 0.5) * scale)
        return jnp.clip(idx.astype(jnp.int32), 0, in_s - 1)

    x = jnp.take(x, src_idx(size[0], x.shape[2]), axis=2)
    x = jnp.take(x, src_idx(size[1], x.shape[3]), axis=3)
    x = jnp.take(x, src_idx(size[2], x.shape[4]), axis=4)
    return x


# ----------------------------------------------------------------------------
# FPN parameters (deterministic synthetic init, kaiming_uniform-style, bias=0)
# ----------------------------------------------------------------------------
def init_fpn_params(key, in_channels_list, out_channels):
    params = {"inner_w": [], "inner_b": [], "layer_w": [], "layer_b": []}
    for cin in in_channels_list:
        key, k1, k2 = jax.random.split(key, 3)
        bound1 = (3.0 / cin) ** 0.5
        w1 = jax.random.uniform(k1, (out_channels, cin), jnp.float32,
                                -bound1, bound1)
        params["inner_w"].append(w1)
        params["inner_b"].append(jnp.zeros((out_channels,), jnp.float32))
        bound3 = (3.0 / (out_channels * 27)) ** 0.5
        w3 = jax.random.uniform(k2, (3, 3, 3, out_channels, out_channels),
                                jnp.float32, -bound3, bound3)
        params["layer_w"].append(w3)
        params["layer_b"].append(jnp.zeros((out_channels,), jnp.float32))
    return params


# ----------------------------------------------------------------------------
# FPN forward (matches FeaturePyramidNetwork.forward, extra_blocks=None)
# ----------------------------------------------------------------------------
def fpn_forward(x_dict, params):
    # TODO(synk): extra_blocks (ExtraFPNBlock) not implemented; module default is None.
    # TODO(synk): further HBM savings possible by fusing the per-level 1x1 and
    # 3x3 convs into one pallas_call (write last_inner directly in the padded
    # plane layout); kept as two calls for clarity.
    names = list(x_dict.keys())
    xs = list(x_dict.values())            # NCDHW, channels-first throughout
    num_levels = len(xs)

    # last_inner is only consumed as a bf16 MXU operand (3x3 conv) and as the
    # top-down residual, so it is stored in bf16 (halves its HBM traffic).
    last_inner = conv3d_1x1(xs[-1], params["inner_w"][-1], params["inner_b"][-1],
                            out_dtype=MATMUL_DTYPE)
    results = [conv3d_3x3(last_inner, params["layer_w"][-1], params["layer_b"][-1])]

    for idx in range(num_levels - 2, -1, -1):
        feat_shape = xs[idx].shape[2:]                       # (D, H, W)
        inner_top_down = nearest_exact_resize(last_inner, feat_shape)
        # inner_lateral + inner_top_down: fused into the 1x1 kernel as residual.
        last_inner = conv3d_1x1(xs[idx], params["inner_w"][idx],
                                params["inner_b"][idx],
                                residual=inner_top_down,
                                out_dtype=MATMUL_DTYPE)
        results.insert(0, conv3d_3x3(last_inner, params["layer_w"][idx],
                                     params["layer_b"][idx]))

    return OrderedDict((k, v) for k, v in zip(names, results))


# ----------------------------------------------------------------------------
# Pure-JAX reference (mirrors the bf16 casts of the kernels) for a self-check
# ----------------------------------------------------------------------------
def _ref_conv1x1(x, w, b, residual=None, out_dtype=jnp.float32):
    y = jnp.einsum("oi,nidhw->nodhw", w.astype(MATMUL_DTYPE),
                   x.astype(MATMUL_DTYPE), preferred_element_type=jnp.float32)
    y = y + b.reshape(1, -1, 1, 1, 1)
    if residual is not None:
        y = y + residual.astype(jnp.float32)
    return y.astype(out_dtype)


def _ref_conv3x3(x, w, b):
    wt = jnp.transpose(w, (3, 4, 0, 1, 2)).astype(MATMUL_DTYPE)  # (O,I,kd,kh,kw)
    y = jax.lax.conv_general_dilated(
        x.astype(MATMUL_DTYPE), wt, window_strides=(1, 1, 1),
        padding=((1, 1), (1, 1), (1, 1)),
        dimension_numbers=("NCDHW", "OIDHW", "NCDHW"),
        preferred_element_type=jnp.float32)
    return y + b.reshape(1, -1, 1, 1, 1)


def _ref_fpn_forward(x_dict, params):
    names = list(x_dict.keys())
    xs = list(x_dict.values())
    num_levels = len(xs)
    last_inner = _ref_conv1x1(xs[-1], params["inner_w"][-1],
                              params["inner_b"][-1], out_dtype=MATMUL_DTYPE)
    results = [_ref_conv3x3(last_inner, params["layer_w"][-1],
                            params["layer_b"][-1])]
    for idx in range(num_levels - 2, -1, -1):
        feat_shape = xs[idx].shape[2:]
        inner_top_down = nearest_exact_resize(last_inner, feat_shape)
        last_inner = _ref_conv1x1(xs[idx], params["inner_w"][idx],
                                  params["inner_b"][idx],
                                  residual=inner_top_down,
                                  out_dtype=MATMUL_DTYPE)
        results.insert(0, _ref_conv3x3(last_inner, params["layer_w"][idx],
                                       params["layer_b"][idx]))
    return OrderedDict((k, v) for k, v in zip(names, results))


# ----------------------------------------------------------------------------
if __name__ == "__main__":
    key = jax.random.PRNGKey(0)

    in_channels_list = [8, 16]
    out_channels = 8
    batch = 2

    key, kp, k0, k1 = jax.random.split(key, 4)
    params = init_fpn_params(kp, in_channels_list, out_channels)

    # feature maps for each pyramid level, NCDHW (Conv3d convention)
    feats = OrderedDict()
    feats["feat0"] = jax.random.normal(k0, (batch, in_channels_list[0], 4, 8, 8),
                                       jnp.float32)
    feats["feat1"] = jax.random.normal(k1, (batch, in_channels_list[1], 2, 4, 4),
                                       jnp.float32)

    out = fpn_forward(feats, params)
    for v in out.values():
        jax.block_until_ready(v)

    assert list(out.keys()) == ["feat0", "feat1"]
    assert out["feat0"].shape == (batch, out_channels, 4, 8, 8)
    assert out["feat1"].shape == (batch, out_channels, 2, 4, 4)

    # numerical self-check against a pure-JAX reference with matching bf16 casts
    ref = _ref_fpn_forward(feats, params)
    for name in out:
        err = float(jnp.max(jnp.abs(out[name] - ref[name])))
        assert err < 5e-2, f"{name}: max abs err {err}"

    print("KERNEL_OK")
</pallas_src>

<mosaic_0001>
module attributes {stable_mosaic.version = 11 : i64} {
  func.func @_conv1x1_kernel(%arg0: i32, %arg1: i32, %arg2: memref<1x16x128xbf16, #tpu.memory_space<vmem>>, %arg3: memref<8x16xbf16, #tpu.memory_space<vmem>>, %arg4: memref<8x1xf32, #tpu.memory_space<vmem>>, %arg5: memref<1x8x128xbf16, #tpu.memory_space<vmem>>) attributes {dimension_semantics = [#tpu.dimension_semantics<parallel>, #tpu.dimension_semantics<parallel>], iteration_bounds = array<i64: 2, 1>, scalar_prefetch = 0 : i64, scratch_operands = 0 : i64, tpu.core_type = #tpu.core_type<tc>, window_params = [{transform_indices = @transform_0, window_bounds = array<i64: 1, 16, 128>}, {pipeline_mode = #tpu.pipeline_mode<synchronous>, transform_indices = @transform_1, window_bounds = array<i64: 8, 16>}, {pipeline_mode = #tpu.pipeline_mode<synchronous>, transform_indices = @transform_2, window_bounds = array<i64: 8, 1>}, {transform_indices = @transform_3, window_bounds = array<i64: 1, 8, 128>}]} {
    %c0 = arith.constant 0 : index
    %c0_0 = arith.constant 0 : index
    %0 = vector.load %arg3[%c0, %c0_0] : memref<8x16xbf16, #tpu.memory_space<vmem>>, vector<8x16xbf16>
    %c0_1 = arith.constant 0 : index
    %c0_2 = arith.constant 0 : index
    %c0_3 = arith.constant 0 : index
    %1 = vector.load %arg2[%c0_1, %c0_2, %c0_3] : memref<1x16x128xbf16, #tpu.memory_space<vmem>>, vector<1x16x128xbf16>
    %2 = vector.shape_cast %1 : vector<1x16x128xbf16> to vector<16x128xbf16>
    %cst = arith.constant dense<0.000000e+00> : vector<8x128xf32>
    %3 = tpu.matmul %0, %2, %cst {dimension_numbers = #tpu.dot_dimension_numbers<[1], [0], [0], [1], [0, 0, 1, 1], [], []>} : vector<8x16xbf16>, vector<16x128xbf16>, vector<8x128xf32> -> vector<8x128xf32>
    %c0_4 = arith.constant 0 : index
    %c0_5 = arith.constant 0 : index
    %4 = vector.load %arg4[%c0_4, %c0_5] : memref<8x1xf32, #tpu.memory_space<vmem>>, vector<8x1xf32>
    %5 = vector.broadcast %4 : vector<8x1xf32> to vector<8x128xf32>
    %6 = arith.addf %3, %5 : vector<8x128xf32>
    %7 = arith.truncf %6 : vector<8x128xf32> to vector<8x128xbf16>
    %c0_6 = arith.constant 0 : index
    %c0_7 = arith.constant 0 : index
    %c0_8 = arith.constant 0 : index
    %8 = vector.load %arg5[%c0_6, %c0_7, %c0_8] : memref<1x8x128xbf16, #tpu.memory_space<vmem>>, vector<1x8x128xbf16>
    %9 = vector.shape_cast %8 : vector<1x8x128xbf16> to vector<8x128xbf16>
    %10 = vector.shape_cast %7 : vector<8x128xbf16> to vector<1x8x128xbf16>
    tpu.vector_store %arg5[%c0_6, %c0_7, %c0_8], %10 {strides = array<i32>} : memref<1x8x128xbf16, #tpu.memory_space<vmem>>, vector<1x8x128xbf16>,
    return
  }
  func.func @transform_0(%arg0: i32, %arg1: i32) -> (i32, i32, i32) {
    %c0_i32 = arith.constant 0 : i32
    %c0_i32_0 = arith.constant 0 : i32
    return %arg0, %c0_i32, %arg1 : i32, i32, i32
  }
  func.func @transform_1(%arg0: i32, %arg1: i32) -> (i32, i32) {
    %c0_i32 = arith.constant 0 : i32
    %c0_i32_0 = arith.constant 0 : i32
    %c0_i32_1 = arith.constant 0 : i32
    return %c0_i32, %c0_i32_0 : i32, i32
  }
  func.func @transform_2(%arg0: i32, %arg1: i32) -> (i32, i32) {
    %c0_i32 = arith.constant 0 : i32
    %c0_i32_0 = arith.constant 0 : i32
    %c0_i32_1 = arith.constant 0 : i32
    return %c0_i32, %c0_i32_0 : i32, i32
  }
  func.func @transform_3(%arg0: i32, %arg1: i32) -> (i32, i32, i32) {
    %c0_i32 = arith.constant 0 : i32
    %c0_i32_0 = arith.constant 0 : i32
    return %arg0, %c0_i32, %arg1 : i32, i32, i32
  }
}

</mosaic_0001>

<llo_original>
// kernel: tpu_custom_call.1
$region0: #{tpu_custom_call.1}
  #allocation0 [shape = 'u32[]', space=smem, size = 0x4, offset = 0x4, fixed_abs, tag = 'smem constant byte address 0x4 - core index']
  #allocation1 [shape = 'u32[144,128]{1,0:T(1,128)}', space=vmem, size = 0x12000, scoped, tag = 'internal scratch']
  %s0 = inlined_call_operand.hbm [shape: bf16[2,16,128], index: 0, kind: input, shape index: {}]
  %s1 = inlined_call_operand.vmem [shape: bf16[8,16], index: 1, kind: input, shape index: {}]
  %s2 = inlined_call_operand.vmem [shape: f32[8,1], index: 2, kind: input, shape index: {}]
  %s3 = inlined_call_operand.hbm [shape: bf16[2,8,128], index: 3, kind: output, shape index: {}]
  %s4 = sld [smem:[#allocation0]]
  $region49: #{tpu_custom_call.1} parent=0
    _
  %s6 = ssub.s32 1, %s4
  %s7 = scalar_select 0, %s6, %s4
  $region1: #{tpu_custom_call.1} parent=0
    #allocation2 [shape = 'u8[8192]{0}', space=vmem, size = 0x2000, scoped, tag = 'input window, operand 0']
    #allocation3 [shape = 's32[2]{0}', space=sflag, size = 0x8, scoped, tag = 'scoped memory for tpu_custom_call.1']
    #allocation4 [shape = 's32[2]{0}', space=sflag, size = 0x8, scoped, tag = 'scoped memory for tpu_custom_call.1']
    #allocation5 [shape = 'u8[4096]{0}', space=vmem, size = 0x1000, scoped, tag = 'output window, operand 0']
    %8 = vsyncpa [#allocation3], 0
    %s9 = scalar_lea.sflag [#allocation3], 1
    %10 = vsyncpa %s9, 0
    %11 = vsyncpa [#allocation4], 0
    %s12 = scalar_lea.sflag [#allocation4], 1
    %13 = vsyncpa %s12, 0
    loop: start=0, step=1, limit=4
    $region2: #{tpu_custom_call.1} parent=1 // loop_pre_header
      _
    $region3: #{tpu_custom_call.1} parent=1 // loop_header
      %s15 = sphi 0, %s19
      %p16 = scmp.ge.s32.totalorder %s15, 4
      %s22 = sphi 0, %s34
      %s23 = sphi 0, %s30
      %s24 = sphi 0, %s22
      %s25 = sphi 0, %s23
      %s26 = sphi 0, %s24
      %s27 = sphi 0, %s25
      %s39 = sphi 0, %s41
      %s42 = sphi 0, %s39
      %s43 = sphi 0, %s42
      %s59 = sphi 0, %s43
      %s63 = sphi 0, %s63
      %s65 = sphi 0, %s63
      %s66 = sphi 0, %s65
      %s80 = sphi 0, %s66
      %s84 = sphi 0, %s84
      %s86 = sphi 0, %s84
      %s87 = sphi 0, %s86
      %s101 = sphi 0, %s87
      %s109 = sphi 0, %s111
      %s112 = sphi 0, %s109
      %s113 = sphi 0, %s112
      %s129 = sphi 0, %s113
    $region4: #{tpu_custom_call.1} parent=1 // loop_header_branch
      %18 = sbr.rel (%p16) target = $region8
    $region5: #{tpu_custom_call.1} parent=1 // loop_body
      %s20 = ssub.s32 %s15, 1
      %s21 = ssub.s32 %s15, 2
      %s28 = sadd.s32 1, %s23
      %p29 = scmp.ge.s32.totalorder %s28, 1
      %s30 = scalar_select %p29, 0, %s28
      %s31 = sadd.s32 1, %s22
      %s32 = scalar_select %p29, %s31, %s22
      %p33 = scmp.ge.s32.totalorder %s32, 2
      %s34 = scalar_select %p33, 0, %s32
      %s35 = ssub.s32 %s22, %s34
      %s36 = ssub.s32 %s23, %s30
      %s37 = sor.u32 %s35, %s36
      %p38 = scmp.eq.s32.totalorder %s37, 0
      %s40 = sadd.s32 %s39, 1
      %s41 = scalar_select %p38, %s39, %s40
      %p44 = pneg %p38
      %p45 = scmp.eq.s32.totalorder %s15, 1
      %p46 = por %p44, %p45
      %p47 = scmp.ne.s32.totalorder %s39, %s42
      %p48 = scmp.eq.s32.totalorder %s15, 0
      %p49 = por %p47, %p48
      %p50 = scmp.ne.s32.totalorder %s39, %s42
      %p51 = scmp.eq.s32.totalorder %s20, 1
      %p52 = por %p50, %p51
      %p53 = scmp.ne.s32.totalorder %s42, %s43
      %p54 = scmp.eq.s32.totalorder %s20, 0
      %p55 = por %p53, %p54
      %p56 = scmp.ne.s32.totalorder %s42, %s43
      %p57 = scmp.eq.s32.totalorder %s21, 1
      %p58 = por %p56, %p57
      %p60 = scmp.ne.s32.totalorder %s43, %s59
      %p61 = scmp.eq.s32.totalorder %s21, 0
      %p62 = por %p60, %p61
      %s64 = sadd.s32 %s63, 1
      %p67 = scmp.eq.s32.totalorder %s15, 1
      %p68 = scmp.ne.s32.totalorder %s63, %s65
      %p69 = scmp.eq.s32.totalorder %s15, 0
      %p70 = por %p68, %p69
      %p71 = scmp.ne.s32.totalorder %s63, %s65
      %p72 = scmp.eq.s32.totalorder %s20, 1
      %p73 = por %p71, %p72
      %p74 = scmp.ne.s32.totalorder %s65, %s66
      %p75 = scmp.eq.s32.totalorder %s20, 0
      %p76 = por %p74, %p75
      %p77 = scmp.ne.s32.totalorder %s65, %s66
      %p78 = scmp.eq.s32.totalorder %s21, 1
      %p79 = por %p77, %p78
      %p81 = scmp.ne.s32.totalorder %s66, %s80
      %p82 = scmp.eq.s32.totalorder %s21, 0
      %p83 = por %p81, %p82
      %s85 = sadd.s32 %s84, 1
      %p88 = scmp.eq.s32.totalorder %s15, 1
      %p89 = scmp.ne.s32.totalorder %s84, %s86
      %p90 = scmp.eq.s32.totalorder %s15, 0
      %p91 = por %p89, %p90
      %p92 = scmp.ne.s32.totalorder %s84, %s86
      %p93 = scmp.eq.s32.totalorder %s20, 1
      %p94 = por %p92, %p93
      %p95 = scmp.ne.s32.totalorder %s86, %s87
      %p96 = scmp.eq.s32.totalorder %s20, 0
      %p97 = por %p95, %p96
      %p98 = scmp.ne.s32.totalorder %s86, %s87
      %p99 = scmp.eq.s32.totalorder %s21, 1
      %p100 = por %p98, %p99
      %p102 = scmp.ne.s32.totalorder %s87, %s101
      %p103 = scmp.eq.s32.totalorder %s21, 0
      %p104 = por %p102, %p103
      %s105 = ssub.s32 %s22, %s34
      %s106 = ssub.s32 %s23, %s30
      %s107 = sor.u32 %s105, %s106
      %p108 = scmp.eq.s32.totalorder %s107, 0
      %s110 = sadd.s32 %s109, 1
      %s111 = scalar_select %p108, %s109, %s110
      %p114 = pneg %p108
      %p115 = scmp.eq.s32.totalorder %s15, 1
      %p116 = por %p114, %p115
      %p117 = scmp.ne.s32.totalorder %s109, %s112
      %p118 = scmp.eq.s32.totalorder %s15, 0
      %p119 = por %p117, %p118
      %p120 = scmp.ne.s32.totalorder %s109, %s112
      %p121 = scmp.eq.s32.totalorder %s20, 1
      %p122 = por %p120, %p121
      %p123 = scmp.ne.s32.totalorder %s112, %s113
      %p124 = scmp.eq.s32.totalorder %s20, 0
      %p125 = por %p123, %p124
      %p126 = scmp.ne.s32.totalorder %s112, %s113
      %p127 = scmp.eq.s32.totalorder %s21, 1
      %p128 = por %p126, %p127
      %p130 = scmp.ne.s32.totalorder %s113, %s129
      %p131 = scmp.eq.s32.totalorder %s21, 0
      %p132 = por %p130, %p131
      %p133 = scmp.le.s32.totalorder 1, %s15
      %p134 = scmp.lt.s32.totalorder %s15, 3
      %p135 = pnand %p133, %p134
      %p136 = pneg %p135
      // Predicated region
      $region9: #{tpu_custom_call.1} parent=5 // pred_check
        _
      $region10: #{tpu_custom_call.1} parent=5 // pred_check_branch
        %138 = sbr.rel (%p135) target = $region12
      $region11: #{tpu_custom_call.1} parent=5 // pred_region
        %s139 = ssub.s32 %s15, 1
        // Predicated region
        $region13: #{tpu_custom_call.1} parent=11 // pred_check
          %p140 = pneg %p76
        $region14: #{tpu_custom_call.1} parent=11 // pred_check_branch
          %142 = sbr.rel (%p140) target = $region16
        $region15: #{tpu_custom_call.1} parent=11 // pred_region
          _
        $region16: #{tpu_custom_call.1} parent=11 // pred_fallthru
          _
        // Predicated region
        $region17: #{tpu_custom_call.1} parent=11 // pred_check
          %p143 = pneg %p97
        $region18: #{tpu_custom_call.1} parent=11 // pred_check_branch
          %145 = sbr.rel (%p143) target = $region20
        $region19: #{tpu_custom_call.1} parent=11 // pred_region
          _
        $region20: #{tpu_custom_call.1} parent=11 // pred_fallthru
          _
      $region12: #{tpu_custom_call.1} parent=5 // pred_fallthru
        _
      %p146 = scmp.lt.s32.totalorder %s15, 2
      // Predicated region
      $region21: #{tpu_custom_call.1} parent=5 // pred_check
        %p147 = pneg %p146
      $region22: #{tpu_custom_call.1} parent=5 // pred_check_branch
        %149 = sbr.rel (%p147) target = $region24
      $region23: #{tpu_custom_call.1} parent=5 // pred_region
        // Predicated region
        $region25: #{tpu_custom_call.1} parent=23 // pred_check
          %p150 = pneg %p49
        $region26: #{tpu_custom_call.1} parent=23 // pred_check_branch
          %152 = sbr.rel (%p150) target = $region28
        $region27: #{tpu_custom_call.1} parent=23 // pred_region
          %s153 = sand.u32 %s39, 1
          %s154 = scalar_lea.sflag [#allocation3], %s153
          %s155 = sand.u32 %s39, 1
          %s156 = smul.addr %s155, 8
          %s157 = scalar_lea.vmem [#allocation2], %s156
          %s159 = ssub.s32 128, 128
          %160 = vsyncadd %s154, %s159
          %s161 = smul.addr %s22, 2
          %s162 = sadd.s32 %s23, %s161
          %s163 = smul.addr %s162, 64
          %s164 = scalar_lea.hbm %s0, %s163
          %s165 = sshll.u32 %s157, 4
          %s166 = int_to_ptr.vmem [resolvable:$true] %s165
          %171 = dma.hbm_to_vmem [thread:$0]  %s164, 128, %s166, %s154, 64, 64, 4
        $region28: #{tpu_custom_call.1} parent=23 // pred_fallthru
          _
      $region24: #{tpu_custom_call.1} parent=5 // pred_fallthru
        _
      %p172 = scmp.le.s32.totalorder 1, %s15
      %p173 = scmp.lt.s32.totalorder %s15, 3
      %p174 = pnand %p172, %p173
      %p175 = pneg %p174
      // Predicated region
      $region29: #{tpu_custom_call.1} parent=5 // pred_check
        _
      $region30: #{tpu_custom_call.1} parent=5 // pred_check_branch
        %177 = sbr.rel (%p174) target = $region32
      $region31: #{tpu_custom_call.1} parent=5 // pred_region
        %s178 = ssub.s32 %s15, 1
        %s179 = sand.u32 %s42, 1
        %s180 = scalar_lea.sflag [#allocation3], %s179
        %s181 = sand.u32 %s42, 1
        %s182 = smul.addr %s181, 8
        %s183 = scalar_lea.vmem [#allocation2], %s182
        // Predicated region
        $region33: #{tpu_custom_call.1} parent=31 // pred_check
          %p184 = pneg %p55
        $region34: #{tpu_custom_call.1} parent=31 // pred_check_branch
          %186 = sbr.rel (%p184) target = $region36
        $region35: #{tpu_custom_call.1} parent=31 // pred_region
          %187 = dma.done %s180, 128
        $region36: #{tpu_custom_call.1} parent=31 // pred_fallthru
          _
        %s188 = sand.u32 %s42, 1
        %s189 = scalar_lea.sflag [#allocation3], %s188
        %s190 = sand.u32 %s42, 1
        %s191 = smul.addr %s190, 8
        %s192 = scalar_lea.vmem [#allocation2], %s191
        %p193 = pneg %p55
        %p194 = pneg %p52
        %p195 = pneg %p76
        %p196 = pneg %p73
        %p197 = pneg %p97
        %p198 = pneg %p94
        %p199 = pneg %p125
        %p200 = pneg %p122
        %s201 = sand.u32 %s112, 1
        %s202 = scalar_lea.sflag [#allocation4], %s201
        %s203 = sand.u32 %s112, 1
        %s204 = smul.addr %s203, 4
        %s205 = scalar_lea.vmem [#allocation5], %s204
        %v207 = vld [vmem:[%s1] sm:$0xf]
        %v208 = vld [vmem:[%s183] sm:$0xf]
        %v209 = vld [vmem:[%s183 + $0x4] sm:$0xf]
        %v210 = vld [vmem:[%s2] sm:$0xff]
        %212 = vset.pattern.permute.xlu0 0
        %213 = vperm.xlu0 %212, %v210
        %v214 = vpop.permute.xlu0 %213
        %v218 = vunpack.c.l.b16 %v208
        %v219 = vunpack.c.l.b16 %v209
        %v220 = vpack.c.b16 %v219, %v218
        %vm222 = vcmask 130048
        %v224 = vsel %vm222, %v207, 0
        %226 = vmatprep.subr.bf16.mxu0 0
        %227 = vmatpush1.bf16.msra.mxu0 %v220
        %228 = vmatprep.subr.bf16.mxu0 0
        %229 = vmatpush1.bf16.msra.mxu0 0
        %230 = vmatprep.subr.bf16.mxu0 0
        %231 = vmatpush1.bf16.msra.mxu0 0
        %232 = vmatprep.subr.bf16.mxu0 0
        %233 = vmatpush1.bf16.msra.mxu0 0
        %234 = vmatprep.subr.bf16.mxu0 0
        %235 = vmatpush1.bf16.msra.mxu0 0
        %236 = vmatprep.subr.bf16.mxu0 0
        %237 = vmatpush1.bf16.msra.mxu0 0
        %238 = vmatprep.subr.bf16.mxu0 0
        %239 = vmatpush1.bf16.msra.mxu0 0
        %240 = vmatprep.subr.bf16.mxu0 0
        %241 = vmatpush1.bf16.msra.mxu0 0
        %242 = vmatprep.subr.bf16.mxu0 0
        %243 = vmatpush1.bf16.msra.mxu0 0
        %244 = vmatprep.subr.bf16.mxu0 0
        %245 = vmatpush1.bf16.msra.mxu0 0
        %246 = vmatprep.subr.bf16.mxu0 0
        %247 = vmatpush1.bf16.msra.mxu0 0
        %248 = vmatprep.subr.bf16.mxu0 0
        %249 = vmatpush1.bf16.msra.mxu0 0
        %250 = vmatprep.subr.bf16.mxu0 0
        %251 = vmatpush1.bf16.msra.mxu0 0
        %252 = vmatprep.subr.bf16.mxu0 0
        %253 = vmatpush1.bf16.msra.mxu0 0
        %254 = vmatprep.subr.bf16.mxu0 0
        %255 = vmatpush1.bf16.msra.mxu0 0
        %256 = vmatprep.subr.bf16.mxu0 0
        %257 = vmatpush1.bf16.msra.mxu0 0
        %258 = vmatprep.mubr.bf16.mxu0 0
        %259 = vmatmul.mubr.bf16.gmra.mrb[0].mxu0 %v224
        %v260 = vpop.f32.mrb[0].mxu0
        %v261 = vadd.f32 %v214, %v260
        %v262 = vpop.f32.mrb[0].mxu0
        %v263 = vpop.f32.mrb[0].mxu0
        %v264 = vpop.f32.mrb[0].mxu0
        %265 = vdwg.mxu0
        %v266 = vpack.c.bf16 %v261, %v261
        %267 = vst [vmem:[%s205] sm:$0xf] %v266
        %s268 = sand.u32 %s112, 1
        %s269 = scalar_lea.sflag [#allocation4], %s268
        %s270 = sand.u32 %s112, 1
        %s271 = smul.addr %s270, 4
        %s272 = scalar_lea.vmem [#allocation5], %s271
        // Predicated region
        $region37: #{tpu_custom_call.1} parent=31 // pred_check
          %p273 = pneg %p122
        $region38: #{tpu_custom_call.1} parent=31 // pred_check_branch
          %275 = sbr.rel (%p273) target = $region40
        $region39: #{tpu_custom_call.1} parent=31 // pred_region
          %s277 = ssub.s32 64, 64
          %278 = vsyncadd %s269, %s277
          %s279 = sadd.s32 %s25, %s24
          %s280 = smul.addr %s279, 64
          %s281 = scalar_lea.hbm %s3, %s280
          %s283 = sshll.u32 %s272, 4
          %s284 = int_to_ptr.vmem [resolvable:$true] %s283
          %286 = dma.vmem_to_hbm [thread:$0]  %s284, 64, %s281, %s269
        $region40: #{tpu_custom_call.1} parent=31 // pred_fallthru
          _
      $region32: #{tpu_custom_call.1} parent=5 // pred_fallthru
        _
      %p287 = scmp.le.s32.totalorder 2, %s15
      // Predicated region
      $region41: #{tpu_custom_call.1} parent=5 // pred_check
        %p288 = pneg %p287
      $region42: #{tpu_custom_call.1} parent=5 // pred_check_branch
        %290 = sbr.rel (%p288) target = $region44
      $region43: #{tpu_custom_call.1} parent=5 // pred_region
        %s291 = ssub.s32 %s15, 2
        // Predicated region
        $region45: #{tpu_custom_call.1} parent=43 // pred_check
          %p292 = pneg %p128
        $region46: #{tpu_custom_call.1} parent=43 // pred_check_branch
          %294 = sbr.rel (%p292) target = $region48
        $region47: #{tpu_custom_call.1} parent=43 // pred_region
          %s295 = sand.u32 %s113, 1
          %s296 = scalar_lea.sflag [#allocation4], %s295
          %s297 = sand.u32 %s113, 1
          %s298 = smul.addr %s297, 4
          %s299 = scalar_lea.vmem [#allocation5], %s298
          %300 = dma.done %s296, 64
        $region48: #{tpu_custom_call.1} parent=43 // pred_fallthru
          _
      $region44: #{tpu_custom_call.1} parent=5 // pred_fallthru
        _
    $region6: #{tpu_custom_call.1} parent=1 // loop_footer
      %s19 = sadd.s32 1, %s15
    $region7: #{tpu_custom_call.1} parent=1 // loop_footer_branch
      %14 = sbr.rel target = $region3
    $region8: #{tpu_custom_call.1} parent=1 // loop_exit
      _
    %301 = vsyncpa [#allocation3], 1
    %s302 = scalar_lea.sflag [#allocation3], 1
    %303 = vsyncpa %s302, 1
    %304 = vsyncpa [#allocation4], 1
    %s305 = scalar_lea.sflag [#allocation4], 1
    %306 = vsyncpa %s305, 1

</llo_original>
